<compile_context>
chip_gen: v5e
topology: v5e:2x2
jax: 0.10.0
libtpu: 0.0.40
codegen_flags: <defaults>
</compile_context>

<pallas_src>
import jax
import jax.numpy as jnp
from jax.experimental import pallas as pl
from jax.experimental.pallas import tpu as pltpu


# ---------------------------------------------------------------------------
# Kernels
# ---------------------------------------------------------------------------

def _tanh_copy_kernel(x_ref, o_ref, t_ref):
    """One lane-dense (tm, tn) tile of the (B, 2n) output per grid step.

    Innermost grid axis c in {0, 1} selects which duplicated half we write.
    tanh is computed only once (c == 0), cached in a VMEM scratch tile and
    replayed at c == 1 (never written back into x_ref -- the pipeline may
    reuse that buffer).
    """
    c = pl.program_id(2)

    @pl.when(c == 0)
    def _():
        t = jnp.tanh(x_ref[...]).astype(o_ref.dtype)
        t_ref[...] = t
        o_ref[...] = t

    @pl.when(c != 0)
    def _():
        o_ref[...] = t_ref[...]


def _tanh_dup_rows_kernel(x_ref, o_ref):
    """Row-tiled fallback for feature dims not divisible by 128."""
    n = x_ref.shape[1]
    t = jnp.tanh(x_ref[...]).astype(o_ref.dtype)
    o_ref[:, :n] = t
    o_ref[:, n:] = t


# ---------------------------------------------------------------------------
# Tiling helpers
# ---------------------------------------------------------------------------

_COL_CANDIDATES = (2048, 1536, 1024, 768, 512, 384, 256, 128)
_SMALL_OUT_BYTES = 256 * 1024     # below this, launch overhead dominates


def _pick_div_tile(dim, candidates):
    """Largest candidate that evenly divides `dim`, else the full extent."""
    for c in candidates:
        if c <= dim and dim % c == 0:
            return c
    return dim


def _row_tile(batch, sub, cap=256):
    """Row tile: full extent if small, else a multiple of the sublane quantum."""
    if batch <= sub:
        return batch
    t = min(batch, cap)
    return max((t // sub) * sub, sub)


# ---------------------------------------------------------------------------
# Wrapper (forward pass of the PyTorch Model)
# ---------------------------------------------------------------------------

def cat_tanh(x):
    """x: (B, ...) -> (B, 2*prod(rest)) == torch.cat([x, x], 1).view(B, -1).tanh()."""
    B = x.shape[0]
    n = 1
    for d in x.shape[1:]:
        n *= d
    x_flat = x.reshape(B, n)                       # contiguous reshape, free in XLA
    itemsize = jnp.dtype(x.dtype).itemsize
    out_bytes = B * 2 * n * itemsize

    # Tiny shapes (incl. the spec (2,3,4)): a fused XLA elementwise wins.
    if n == 0 or out_bytes < _SMALL_OUT_BYTES:
        return jnp.tanh(jnp.concatenate([x_flat, x_flat], axis=1))

    sub = max(8, 32 // itemsize)                   # sublane quantum per dtype

    if n % 128 == 0:
        # ---------------- tiled, pipelined, lane-dense path ----------------
        tm = _row_tile(B, sub)
        tn = _pick_div_tile(n, _COL_CANDIDATES)

        row_blocks = pl.cdiv(B, tm)
        # v7x megacore: ensure a "parallel" axis has >= 2 blocks to shard.
        if row_blocks == 1 and n // tn < 2:
            smaller = [c for c in _COL_CANDIDATES
                       if c < tn and n % c == 0 and n // c >= 2]
            if smaller:
                tn = smaller[0]
        col_blocks = n // tn
        grid = (row_blocks, col_blocks, 2)          # copy axis innermost

        tile_bytes = tm * tn * itemsize
        # 2x in + 2x out (double buffered) + 1 scratch, plus headroom.
        vmem_limit = int(max(16 << 20, min(6 * tile_bytes + (4 << 20), 48 << 20)))

        return pl.pallas_call(
            _tanh_copy_kernel,
            out_shape=jax.ShapeDtypeStruct((B, 2 * n), x.dtype),
            grid_spec=pltpu.PrefetchScalarGridSpec(
                num_scalar_prefetch=0,
                grid=grid,
                in_specs=[pl.BlockSpec((tm, tn), lambda i, j, c: (i, j))],
                out_specs=pl.BlockSpec(
                    (tm, tn), lambda i, j, c: (i, c * col_blocks + j)),
                scratch_shapes=[pltpu.VMEM((tm, tn), x.dtype)],
            ),
            compiler_params=pltpu.CompilerParams(
                dimension_semantics=("parallel", "parallel", "arbitrary"),
                vmem_limit_bytes=vmem_limit),
            cost_estimate=pl.CostEstimate(
                flops=0,
                transcendentals=B * n,
                bytes_accessed=3 * B * n * itemsize),
        )(x_flat)

    # ------------- unaligned feature dim: tile over rows only -------------
    per_row_bytes = 3 * n * itemsize                # one input + two output rows
    budget = 12 << 20                               # keep well under scoped VMEM
    max_rows = budget // (2 * per_row_bytes)        # double-buffered in/out
    if B <= max_rows:
        tm = B
    elif max_rows >= sub:
        tm = int(max_rows // sub) * sub
    else:
        # Even sub rows of this width would not fit comfortably in VMEM.
        return jnp.tanh(jnp.concatenate([x_flat, x_flat], axis=1))

    grid = (pl.cdiv(B, tm),)
    vmem_limit = int(max(16 << 20,
                         min(2 * tm * per_row_bytes + (4 << 20), 48 << 20)))

    return pl.pallas_call(
        _tanh_dup_rows_kernel,
        out_shape=jax.ShapeDtypeStruct((B, 2 * n), x.dtype),
        grid_spec=pltpu.PrefetchScalarGridSpec(
            num_scalar_prefetch=0,
            grid=grid,
            in_specs=[pl.BlockSpec((tm, n), lambda i: (i, 0))],
            out_specs=pl.BlockSpec((tm, 2 * n), lambda i: (i, 0)),
        ),
        compiler_params=pltpu.CompilerParams(
            dimension_semantics=("parallel",),
            vmem_limit_bytes=vmem_limit),
        cost_estimate=pl.CostEstimate(
            flops=0,
            transcendentals=B * n,
            bytes_accessed=3 * B * n * itemsize),
    )(x_flat)


# ---------------------------------------------------------------------------
# Self-test
# ---------------------------------------------------------------------------

if __name__ == "__main__":
    key = jax.random.PRNGKey(0)
    k1, k2, k3 = jax.random.split(key, 3)

    def ref_fn(a):
        return jnp.tanh(jnp.concatenate([a, a], axis=1).reshape(a.shape[0], -1))

    # 1) Spec shape from the PyTorch module: x = torch.randn(2, 3, 4).
    x = jax.random.normal(k1, (2, 3, 4), dtype=jnp.float32)
    out = jax.block_until_ready(cat_tanh(x))
    assert out.shape == (2, 24), out.shape
    assert jnp.allclose(out, ref_fn(x), atol=1e-5), "mismatch (spec shape)"

    # 2) Lane-aligned shape -> tiled/pipelined Pallas path (copy axis + scratch).
    xa = jax.random.normal(k2, (32, 16, 512), dtype=jnp.float32)
    outa = jax.block_until_ready(cat_tanh(xa))
    assert outa.shape == (32, 2 * 16 * 512), outa.shape
    assert jnp.allclose(outa, ref_fn(xa), atol=1e-5), "mismatch (tiled path)"

    # 3) Unaligned feature dim, large enough for the row-tiled Pallas path.
    xu = jax.random.normal(k3, (128, 5, 60), dtype=jnp.float32)
    outu = jax.block_until_ready(cat_tanh(xu))
    assert outu.shape == (128, 2 * 5 * 60), outu.shape
    assert jnp.allclose(outu, ref_fn(xu), atol=1e-5), "mismatch (unaligned path)"

    print("KERNEL_OK")
</pallas_src>

<mosaic_0001>
module attributes {stable_mosaic.version = 11 : i64} {
  func.func @_tanh_copy_kernel(%arg0: i32, %arg1: i32, %arg2: i32, %arg3: memref<32x2048xf32, #tpu.memory_space<vmem>>, %arg4: memref<32x2048xf32, #tpu.memory_space<vmem>>, %arg5: memref<32x2048xf32, #tpu.memory_space<vmem>>) attributes {dimension_semantics = [#tpu.dimension_semantics<parallel>, #tpu.dimension_semantics<parallel>, #tpu.dimension_semantics<arbitrary>], iteration_bounds = array<i64: 1, 4, 2>, scalar_prefetch = 0 : i64, scratch_operands = 1 : i64, tpu.core_type = #tpu.core_type<tc>, window_params = [{transform_indices = @transform_0, window_bounds = array<i64: 32, 2048>}, {transform_indices = @transform_1, window_bounds = array<i64: 32, 2048>}]} {
    %c0_i32 = arith.constant 0 : i32
    %0 = arith.cmpi eq, %arg2, %c0_i32 : i32
    %1 = arith.extui %0 : i1 to i32
    %c0_i32_0 = arith.constant 0 : i32
    %2 = arith.cmpi ne, %1, %c0_i32_0 : i32
    scf.if %2 {
      %c0 = arith.constant 0 : index
      %c0_3 = arith.constant 0 : index
      %6 = vector.load %arg3[%c0, %c0_3] : memref<32x2048xf32, #tpu.memory_space<vmem>>, vector<32x2048xf32>
      %7 = math.tanh %6 : vector<32x2048xf32>
      %c0_4 = arith.constant 0 : index
      %c0_5 = arith.constant 0 : index
      %8 = vector.load %arg5[%c0_4, %c0_5] : memref<32x2048xf32, #tpu.memory_space<vmem>>, vector<32x2048xf32>
      tpu.vector_store %arg5[%c0_4, %c0_5], %7 {strides = array<i32>} : memref<32x2048xf32, #tpu.memory_space<vmem>>, vector<32x2048xf32>,
      %c0_6 = arith.constant 0 : index
      %c0_7 = arith.constant 0 : index
      %9 = vector.load %arg4[%c0_6, %c0_7] : memref<32x2048xf32, #tpu.memory_space<vmem>>, vector<32x2048xf32>
      tpu.vector_store %arg4[%c0_6, %c0_7], %7 {strides = array<i32>} : memref<32x2048xf32, #tpu.memory_space<vmem>>, vector<32x2048xf32>,
    } else {
    }
    %c0_i32_1 = arith.constant 0 : i32
    %3 = arith.cmpi ne, %arg2, %c0_i32_1 : i32
    %4 = arith.extui %3 : i1 to i32
    %c0_i32_2 = arith.constant 0 : i32
    %5 = arith.cmpi ne, %4, %c0_i32_2 : i32
    scf.if %5 {
      %c0 = arith.constant 0 : index
      %c0_3 = arith.constant 0 : index
      %6 = vector.load %arg5[%c0, %c0_3] : memref<32x2048xf32, #tpu.memory_space<vmem>>, vector<32x2048xf32>
      %c0_4 = arith.constant 0 : index
      %c0_5 = arith.constant 0 : index
      %7 = vector.load %arg4[%c0_4, %c0_5] : memref<32x2048xf32, #tpu.memory_space<vmem>>, vector<32x2048xf32>
      tpu.vector_store %arg4[%c0_4, %c0_5], %6 {strides = array<i32>} : memref<32x2048xf32, #tpu.memory_space<vmem>>, vector<32x2048xf32>,
    } else {
    }
    return
  }
  func.func @transform_0(%arg0: i32, %arg1: i32, %arg2: i32) -> (i32, i32) {
    %c0_i32 = arith.constant 0 : i32
    return %arg0, %arg1 : i32, i32
  }
  func.func @transform_1(%arg0: i32, %arg1: i32, %arg2: i32) -> (i32, i32) {
    %c4_i32 = arith.constant 4 : i32
    %0 = arith.muli %arg2, %c4_i32 : i32
    %1 = arith.addi %0, %arg1 : i32
    %c0_i32 = arith.constant 0 : i32
    return %arg0, %1 : i32, i32
  }
}

</mosaic_0001>

<llo_original>
// kernel: tpu_custom_call.1
$region0: #{tpu_custom_call.1}
  #allocation0 [shape = 'u32[]', space=smem, size = 0x4, offset = 0x4, fixed_abs, tag = 'smem constant byte address 0x4 - core index']
  #allocation1 [shape = 'u32[72,128]{1,0:T(1,128)}', space=vmem, size = 0x9000, scoped, tag = 'internal scratch']
  #allocation2 [shape = 'f32[32,2048]{1,0:T(8,128)}', space=vmem, size = 0x40000, scoped, tag = 'scratch operand']
  %s0 = inlined_call_operand.hbm [shape: f32[32,8192], index: 0, kind: input, shape index: {}]
  %s1 = inlined_call_operand.hbm [shape: f32[32,16384], index: 1, kind: output, shape index: {}]
  %s2 = sld [smem:[#allocation0]]
  $region49: #{tpu_custom_call.1} parent=0
    _
  %s4 = ssub.s32 1, %s2
  %s5 = scalar_select 0, %s4, %s2
  $region1: #{tpu_custom_call.1} parent=0
    #allocation3 [shape = 'u8[524288]{0}', space=vmem, size = 0x80000, scoped, tag = 'input window, operand 0']
    #allocation4 [shape = 's32[2]{0}', space=sflag, size = 0x8, scoped, tag = 'scoped memory for tpu_custom_call.1']
    #allocation5 [shape = 's32[2]{0}', space=sflag, size = 0x8, scoped, tag = 'scoped memory for tpu_custom_call.1']
    #allocation6 [shape = 'u8[524288]{0}', space=vmem, size = 0x80000, scoped, tag = 'output window, operand 0']
    %6 = vsyncpa [#allocation4], 0
    %s7 = scalar_lea.sflag [#allocation4], 1
    %8 = vsyncpa %s7, 0
    %9 = vsyncpa [#allocation5], 0
    %s10 = scalar_lea.sflag [#allocation5], 1
    %11 = vsyncpa %s10, 0
    loop: start=0, step=1, limit=10
    $region2: #{tpu_custom_call.1} parent=1 // loop_pre_header
      _
    $region3: #{tpu_custom_call.1} parent=1 // loop_header
      %s13 = sphi 0, %s17
      %p14 = scmp.ge.s32.totalorder %s13, 10
      %s20 = sphi 0, %s39
      %s21 = sphi 0, %s35
      %s22 = sphi 0, %s31
      %s23 = sphi 0, %s20
      %s24 = sphi 0, %s21
      %s25 = sphi 0, %s22
      %s26 = sphi 0, %s23
      %s27 = sphi 0, %s24
      %s28 = sphi 0, %s25
      %s44 = sphi 0, %s46
      %s47 = sphi 0, %s44
      %s48 = sphi 0, %s47
      %s64 = sphi 0, %s48
      %s76 = sphi 0, %s78
      %s79 = sphi 0, %s76
      %s80 = sphi 0, %s79
      %s96 = sphi 0, %s80
    $region4: #{tpu_custom_call.1} parent=1 // loop_header_branch
      %16 = sbr.rel (%p14) target = $region8
    $region5: #{tpu_custom_call.1} parent=1 // loop_body
      %s18 = ssub.s32 %s13, 1
      %s19 = ssub.s32 %s13, 2
      %s29 = sadd.s32 1, %s22
      %p30 = scmp.ge.s32.totalorder %s29, 2
      %s31 = scalar_select %p30, 0, %s29
      %s32 = sadd.s32 1, %s21
      %s33 = scalar_select %p30, %s32, %s21
      %p34 = scmp.ge.s32.totalorder %s33, 4
      %s35 = scalar_select %p34, 0, %s33
      %s36 = sadd.s32 1, %s20
      %s37 = scalar_select %p34, %s36, %s20
      %p38 = scmp.ge.s32.totalorder %s37, 1
      %s39 = scalar_select %p38, 0, %s37
      %s40 = ssub.s32 %s20, %s39
      %s41 = ssub.s32 %s21, %s35
      %s42 = sor.u32 %s40, %s41
      %p43 = scmp.eq.s32.totalorder %s42, 0
      %s45 = sadd.s32 %s44, 1
      %s46 = scalar_select %p43, %s44, %s45
      %p49 = pneg %p43
      %p50 = scmp.eq.s32.totalorder %s13, 7
      %p51 = por %p49, %p50
      %p52 = scmp.ne.s32.totalorder %s44, %s47
      %p53 = scmp.eq.s32.totalorder %s13, 0
      %p54 = por %p52, %p53
      %p55 = scmp.ne.s32.totalorder %s44, %s47
      %p56 = scmp.eq.s32.totalorder %s18, 7
      %p57 = por %p55, %p56
      %p58 = scmp.ne.s32.totalorder %s47, %s48
      %p59 = scmp.eq.s32.totalorder %s18, 0
      %p60 = por %p58, %p59
      %p61 = scmp.ne.s32.totalorder %s47, %s48
      %p62 = scmp.eq.s32.totalorder %s19, 7
      %p63 = por %p61, %p62
      %p65 = scmp.ne.s32.totalorder %s48, %s64
      %p66 = scmp.eq.s32.totalorder %s19, 0
      %p67 = por %p65, %p66
      %s68 = smul.u32 %s22, 4
      %s69 = sadd.s32 %s68, %s21
      %s70 = smul.u32 %s31, 4
      %s71 = sadd.s32 %s70, %s35
      %s72 = ssub.s32 %s20, %s39
      %s73 = ssub.s32 %s69, %s71
      %s74 = sor.u32 %s72, %s73
      %p75 = scmp.eq.s32.totalorder %s74, 0
      %s77 = sadd.s32 %s76, 1
      %s78 = scalar_select %p75, %s76, %s77
      %p81 = pneg %p75
      %p82 = scmp.eq.s32.totalorder %s13, 7
      %p83 = por %p81, %p82
      %p84 = scmp.ne.s32.totalorder %s76, %s79
      %p85 = scmp.eq.s32.totalorder %s13, 0
      %p86 = por %p84, %p85
      %p87 = scmp.ne.s32.totalorder %s76, %s79
      %p88 = scmp.eq.s32.totalorder %s18, 7
      %p89 = por %p87, %p88
      %p90 = scmp.ne.s32.totalorder %s79, %s80
      %p91 = scmp.eq.s32.totalorder %s18, 0
      %p92 = por %p90, %p91
      %p93 = scmp.ne.s32.totalorder %s79, %s80
      %p94 = scmp.eq.s32.totalorder %s19, 7
      %p95 = por %p93, %p94
      %p97 = scmp.ne.s32.totalorder %s80, %s96
      %p98 = scmp.eq.s32.totalorder %s19, 0
      %p99 = por %p97, %p98
      %p100 = scmp.le.s32.totalorder 1, %s13
      %p101 = scmp.lt.s32.totalorder %s13, 9
      %p102 = pnand %p100, %p101
      %p103 = pneg %p102
      // Predicated region
      $region9: #{tpu_custom_call.1} parent=5 // pred_check
        _
      $region10: #{tpu_custom_call.1} parent=5 // pred_check_branch
        %105 = sbr.rel (%p102) target = $region12
      $region11: #{tpu_custom_call.1} parent=5 // pred_region
        %s106 = ssub.s32 %s13, 1
      $region12: #{tpu_custom_call.1} parent=5 // pred_fallthru
        _
      %p107 = scmp.lt.s32.totalorder %s13, 8
      // Predicated region
      $region13: #{tpu_custom_call.1} parent=5 // pred_check
        %p108 = pneg %p107
      $region14: #{tpu_custom_call.1} parent=5 // pred_check_branch
        %110 = sbr.rel (%p108) target = $region16
      $region15: #{tpu_custom_call.1} parent=5 // pred_region
        // Predicated region
        $region17: #{tpu_custom_call.1} parent=15 // pred_check
          %p111 = pneg %p54
        $region18: #{tpu_custom_call.1} parent=15 // pred_check_branch
          %113 = sbr.rel (%p111) target = $region20
        $region19: #{tpu_custom_call.1} parent=15 // pred_region
          %s114 = sand.u32 %s44, 1
          %s115 = scalar_lea.sflag [#allocation4], %s114
          %s116 = sand.u32 %s44, 1
          %s117 = smul.addr %s116, 512
          %s118 = scalar_lea.vmem [#allocation3], %s117
          %s119 = smul.u32 4, %s20
          %s120 = smul.u32 16, %s21
          %122 = vsyncadd %s115, 0
          %s123 = smul.addr %s119, 64
          %s124 = sadd.s32 %s120, %s123
          %s125 = smul.addr %s124, 8
          %s126 = scalar_lea.hbm %s0, %s125
          %s127 = sshll.u32 %s126, 4
          %s128 = int_to_ptr.hbm [resolvable:$true] %s127
          %s129 = sshll.u32 %s118, 4
          %s130 = int_to_ptr.vmem [resolvable:$true] %s129
          %135 = dma.hbm_to_vmem [thread:$0]  %s128, 8192, %s130, %s115, 8192, 2048, 128
        $region20: #{tpu_custom_call.1} parent=15 // pred_fallthru
          _
      $region16: #{tpu_custom_call.1} parent=5 // pred_fallthru
        _
      %p136 = scmp.le.s32.totalorder 1, %s13
      %p137 = scmp.lt.s32.totalorder %s13, 9
      %p138 = pnand %p136, %p137
      %p139 = pneg %p138
      // Predicated region
      $region21: #{tpu_custom_call.1} parent=5 // pred_check
        _
      $region22: #{tpu_custom_call.1} parent=5 // pred_check_branch
        %141 = sbr.rel (%p138) target = $region24
      $region23: #{tpu_custom_call.1} parent=5 // pred_region
        %s142 = ssub.s32 %s13, 1
        %s143 = sand.u32 %s47, 1
        %s144 = scalar_lea.sflag [#allocation4], %s143
        %s145 = sand.u32 %s47, 1
        %s146 = smul.addr %s145, 512
        %s147 = scalar_lea.vmem [#allocation3], %s146
        // Predicated region
        $region25: #{tpu_custom_call.1} parent=23 // pred_check
          %p148 = pneg %p60
        $region26: #{tpu_custom_call.1} parent=23 // pred_check_branch
          %150 = sbr.rel (%p148) target = $region28
        $region27: #{tpu_custom_call.1} parent=23 // pred_region
          %152 = dma.done %s144, 8192
        $region28: #{tpu_custom_call.1} parent=23 // pred_fallthru
          _
        %s153 = sand.u32 %s47, 1
        %s154 = scalar_lea.sflag [#allocation4], %s153
        %s155 = sand.u32 %s47, 1
        %s156 = smul.addr %s155, 512
        %s157 = scalar_lea.vmem [#allocation3], %s156
        %p158 = pneg %p60
        %p159 = pneg %p57
        %p160 = pneg %p92
        %p161 = pneg %p89
        %s162 = sand.u32 %s79, 1
        %s163 = scalar_lea.sflag [#allocation5], %s162
        %s164 = sand.u32 %s79, 1
        %s165 = smul.addr %s164, 512
        %s166 = scalar_lea.vmem [#allocation6], %s165
        %s167 = smul.u32 4, %s23
        %s168 = smul.u32 16, %s24
        %s169 = smul.u32 %s25, 4
        %s170 = sadd.s32 %s169, %s24
        %s171 = smul.u32 4, %s23
        %s172 = smul.u32 16, %s170
        %p173 = scmp.eq.s32.totalorder %s25, 0
        // Predicated region
        $region29: #{tpu_custom_call.1} parent=23 // pred_check
          %p174 = pneg %p173
        $region30: #{tpu_custom_call.1} parent=23 // pred_check_branch
          %176 = sbr.rel (%p174) target = $region32
        $region31: #{tpu_custom_call.1} parent=23 // pred_region
          %v177 = vld [vmem:[%s147] sm:$0xff]
          %v178 = vld [vmem:[%s147 + $0x8] sm:$0xff]
          %v179 = vld [vmem:[%s147 + $0x10] sm:$0xff]
          %v180 = vld [vmem:[%s147 + $0x18] sm:$0xff]
          %v181 = vld [vmem:[%s147 + $0x20] sm:$0xff]
          %v182 = vld [vmem:[%s147 + $0x28] sm:$0xff]
          %v183 = vld [vmem:[%s147 + $0x30] sm:$0xff]
          %v184 = vld [vmem:[%s147 + $0x38] sm:$0xff]
          %v185 = vld [vmem:[%s147 + $0x40] sm:$0xff]
          %v186 = vld [vmem:[%s147 + $0x48] sm:$0xff]
          %v187 = vld [vmem:[%s147 + $0x50] sm:$0xff]
          %v188 = vld [vmem:[%s147 + $0x58] sm:$0xff]
          %v189 = vld [vmem:[%s147 + $0x60] sm:$0xff]
          %v190 = vld [vmem:[%s147 + $0x68] sm:$0xff]
          %v191 = vld [vmem:[%s147 + $0x70] sm:$0xff]
          %v192 = vld [vmem:[%s147 + $0x78] sm:$0xff]
          %v193 = vld [vmem:[%s147 + $0x80] sm:$0xff]
          %v194 = vld [vmem:[%s147 + $0x88] sm:$0xff]
          %v195 = vld [vmem:[%s147 + $0x90] sm:$0xff]
          %v196 = vld [vmem:[%s147 + $0x98] sm:$0xff]
          %v197 = vld [vmem:[%s147 + $0xa0] sm:$0xff]
          %v198 = vld [vmem:[%s147 + $0xa8] sm:$0xff]
          %v199 = vld [vmem:[%s147 + $0xb0] sm:$0xff]
          %v200 = vld [vmem:[%s147 + $0xb8] sm:$0xff]
          %v201 = vld [vmem:[%s147 + $0xc0] sm:$0xff]
          %v202 = vld [vmem:[%s147 + $0xc8] sm:$0xff]
          %v203 = vld [vmem:[%s147 + $0xd0] sm:$0xff]
          %v204 = vld [vmem:[%s147 + $0xd8] sm:$0xff]
          %v205 = vld [vmem:[%s147 + $0xe0] sm:$0xff]
          %v206 = vld [vmem:[%s147 + $0xe8] sm:$0xff]
          %v207 = vld [vmem:[%s147 + $0xf0] sm:$0xff]
          %v208 = vld [vmem:[%s147 + $0xf8] sm:$0xff]
          %v209 = vld [vmem:[%s147 + $0x100] sm:$0xff]
          %v210 = vld [vmem:[%s147 + $0x108] sm:$0xff]
          %v211 = vld [vmem:[%s147 + $0x110] sm:$0xff]
          %v212 = vld [vmem:[%s147 + $0x118] sm:$0xff]
          %v213 = vld [vmem:[%s147 + $0x120] sm:$0xff]
          %v214 = vld [vmem:[%s147 + $0x128] sm:$0xff]
          %v215 = vld [vmem:[%s147 + $0x130] sm:$0xff]
          %v216 = vld [vmem:[%s147 + $0x138] sm:$0xff]
          %v217 = vld [vmem:[%s147 + $0x140] sm:$0xff]
          %v218 = vld [vmem:[%s147 + $0x148] sm:$0xff]
          %v219 = vld [vmem:[%s147 + $0x150] sm:$0xff]
          %v220 = vld [vmem:[%s147 + $0x158] sm:$0xff]
          %v221 = vld [vmem:[%s147 + $0x160] sm:$0xff]
          %v222 = vld [vmem:[%s147 + $0x168] sm:$0xff]
          %v223 = vld [vmem:[%s147 + $0x170] sm:$0xff]
          %v224 = vld [vmem:[%s147 + $0x178] sm:$0xff]
          %v225 = vld [vmem:[%s147 + $0x180] sm:$0xff]
          %v226 = vld [vmem:[%s147 + $0x188] sm:$0xff]
          %v227 = vld [vmem:[%s147 + $0x190] sm:$0xff]
          %v228 = vld [vmem:[%s147 + $0x198] sm:$0xff]
          %v229 = vld [vmem:[%s147 + $0x1a0] sm:$0xff]
          %v230 = vld [vmem:[%s147 + $0x1a8] sm:$0xff]
          %v231 = vld [vmem:[%s147 + $0x1b0] sm:$0xff]
          %v232 = vld [vmem:[%s147 + $0x1b8] sm:$0xff]
          %v233 = vld [vmem:[%s147 + $0x1c0] sm:$0xff]
          %v234 = vld [vmem:[%s147 + $0x1c8] sm:$0xff]
          %v235 = vld [vmem:[%s147 + $0x1d0] sm:$0xff]
          %v236 = vld [vmem:[%s147 + $0x1d8] sm:$0xff]
          %v237 = vld [vmem:[%s147 + $0x1e0] sm:$0xff]
          %v238 = vld [vmem:[%s147 + $0x1e8] sm:$0xff]
          %v239 = vld [vmem:[%s147 + $0x1f0] sm:$0xff]
          %v240 = vld [vmem:[%s147 + $0x1f8] sm:$0xff]
          %v241 = vtanh.pop %v177
          %v242 = vtanh.pop %v178
          %v243 = vtanh.pop %v179
          %v244 = vtanh.pop %v180
          %v245 = vtanh.pop %v181
          %v246 = vtanh.pop %v182
          %v247 = vtanh.pop %v183
          %v248 = vtanh.pop %v184
          %v249 = vtanh.pop %v185
          %v250 = vtanh.pop %v186
          %v251 = vtanh.pop %v187
          %v252 = vtanh.pop %v188
          %v253 = vtanh.pop %v189
          %v254 = vtanh.pop %v190
          %v255 = vtanh.pop %v191
          %v256 = vtanh.pop %v192
          %v257 = vtanh.pop %v193
          %v258 = vtanh.pop %v194
          %v259 = vtanh.pop %v195
          %v260 = vtanh.pop %v196
          %v261 = vtanh.pop %v197
          %v262 = vtanh.pop %v198
          %v263 = vtanh.pop %v199
          %v264 = vtanh.pop %v200
          %v265 = vtanh.pop %v201
          %v266 = vtanh.pop %v202
          %v267 = vtanh.pop %v203
          %v268 = vtanh.pop %v204
          %v269 = vtanh.pop %v205
          %v270 = vtanh.pop %v206
          %v271 = vtanh.pop %v207
          %v272 = vtanh.pop %v208
          %v273 = vtanh.pop %v209
          %v274 = vtanh.pop %v210
          %v275 = vtanh.pop %v211
          %v276 = vtanh.pop %v212
          %v277 = vtanh.pop %v213
          %v278 = vtanh.pop %v214
          %v279 = vtanh.pop %v215
          %v280 = vtanh.pop %v216
          %v281 = vtanh.pop %v217
          %v282 = vtanh.pop %v218
          %v283 = vtanh.pop %v219
          %v284 = vtanh.pop %v220
          %v285 = vtanh.pop %v221
          %v286 = vtanh.pop %v222
          %v287 = vtanh.pop %v223
          %v288 = vtanh.pop %v224
          %v289 = vtanh.pop %v225
          %v290 = vtanh.pop %v226
          %v291 = vtanh.pop %v227
          %v292 = vtanh.pop %v228
          %v293 = vtanh.pop %v229
          %v294 = vtanh.pop %v230
          %v295 = vtanh.pop %v231
          %v296 = vtanh.pop %v232
          %v297 = vtanh.pop %v233
          %v298 = vtanh.pop %v234
          %v299 = vtanh.pop %v235
          %v300 = vtanh.pop %v236
          %v301 = vtanh.pop %v237
          %v302 = vtanh.pop %v238
          %v303 = vtanh.pop %v239
          %v304 = vtanh.pop %v240
          %305 = vst [vmem:[#allocation2] sm:$0xff] %v241
          %306 = vst [vmem:[#allocation2 + $0x8] sm:$0xff] %v242
          %307 = vst [vmem:[#allocation2 + $0x10] sm:$0xff] %v243
          %308 = vst [vmem:[#allocation2 + $0x18] sm:$0xff] %v244
          %309 = vst [vmem:[#allocation2 + $0x20] sm:$0xff] %v245
          %310 = vst [vmem:[#allocation2 + $0x28] sm:$0xff] %v246
          %311 = vst [vmem:[#allocation2 + $0x30] sm:$0xff] %v247
          %312 = vst [vmem:[#allocation2 + $0x38] sm:$0xff] %v248
          %313 = vst [vmem:[#allocation2 + $0x40] sm:$0xff] %v249
          %314 = vst [vmem:[#allocation2 + $0x48] sm:$0xff] %v250
          %315 = vst [vmem:[#allocation2 + $0x50] sm:$0xff] %v251
          %316 = vst [vmem:[#allocation2 + $0x58] sm:$0xff] %v252
          %317 = vst [vmem:[#allocation2 + $0x60] sm:$0xff] %v253
          %318 = vst [vmem:[#allocation2 + $0x68] sm:$0xff] %v254
          %319 = vst [vmem:[#allocation2 + $0x70] sm:$0xff] %v255
          %320 = vst [vmem:[#allocation2 + $0x78] sm:$0xff] %v256
          %321 = vst [vmem:[#allocation2 + $0x80] sm:$0xff] %v257
          %322 = vst [vmem:[#allocation2 + $0x88] sm:$0xff] %v258
          %323 = vst [vmem:[#allocation2 + $0x90] sm:$0xff] %v259
          %324 = vst [vmem:[#allocation2 + $0x98] sm:$0xff] %v260
          %325 = vst [vmem:[#allocation2 + $0xa0] sm:$0xff] %v261
          %326 = vst [vmem:[#allocation2 + $0xa8] sm:$0xff] %v262
          %327 = vst [vmem:[#allocation2 + $0xb0] sm:$0xff] %v263
          %328 = vst [vmem:[#allocation2 + $0xb8] sm:$0xff] %v264
          %329 = vst [vmem:[#allocation2 + $0xc0] sm:$0xff] %v265
          %330 = vst [vmem:[#allocation2 + $0xc8] sm:$0xff] %v266
          %331 = vst [vmem:[#allocation2 + $0xd0] sm:$0xff] %v267
          %332 = vst [vmem:[#allocation2 + $0xd8] sm:$0xff] %v268
          %333 = vst [vmem:[#allocation2 + $0xe0] sm:$0xff] %v269
          %334 = vst [vmem:[#allocation2 + $0xe8] sm:$0xff] %v270
          %335 = vst [vmem:[#allocation2 + $0xf0] sm:$0xff] %v271
          %336 = vst [vmem:[#allocation2 + $0xf8] sm:$0xff] %v272
          %337 = vst [vmem:[#allocation2 + $0x100] sm:$0xff] %v273
          %338 = vst [vmem:[#allocation2 + $0x108] sm:$0xff] %v274
          %339 = vst [vmem:[#allocation2 + $0x110] sm:$0xff] %v275
          %340 = vst [vmem:[#allocation2 + $0x118] sm:$0xff] %v276
          %341 = vst [vmem:[#allocation2 + $0x120] sm:$0xff] %v277
          %342 = vst [vmem:[#allocation2 + $0x128] sm:$0xff] %v278
          %343 = vst [vmem:[#allocation2 + $0x130] sm:$0xff] %v279
          %344 = vst [vmem:[#allocation2 + $0x138] sm:$0xff] %v280
          %345 = vst [vmem:[#allocation2 + $0x140] sm:$0xff] %v281
          %346 = vst [vmem:[#allocation2 + $0x148] sm:$0xff] %v282
          %347 = vst [vmem:[#allocation2 + $0x150] sm:$0xff] %v283
          %348 = vst [vmem:[#allocation2 + $0x158] sm:$0xff] %v284
          %349 = vst [vmem:[#allocation2 + $0x160] sm:$0xff] %v285
          %350 = vst [vmem:[#allocation2 + $0x168] sm:$0xff] %v286
          %351 = vst [vmem:[#allocation2 + $0x170] sm:$0xff] %v287
          %352 = vst [vmem:[#allocation2 + $0x178] sm:$0xff] %v288
          %353 = vst [vmem:[#allocation2 + $0x180] sm:$0xff] %v289
          %354 = vst [vmem:[#allocation2 + $0x188] sm:$0xff] %v290
          %355 = vst [vmem:[#allocation2 + $0x190] sm:$0xff] %v291
          %356 = vst [vmem:[#allocation2 + $0x198] sm:$0xff] %v292
          %357 = vst [vmem:[#allocation2 + $0x1a0] sm:$0xff] %v293
          %358 = vst [vmem:[#allocation2 + $0x1a8] sm:$0xff] %v294
          %359 = vst [vmem:[#allocation2 + $0x1b0] sm:$0xff] %v295
          %360 = vst [vmem:[#allocation2 + $0x1b8] sm:$0xff] %v296
          %361 = vst [vmem:[#allocation2 + $0x1c0] sm:$0xff] %v297
          %362 = vst [vmem:[#allocation2 + $0x1c8] sm:$0xff] %v298
          %363 = vst [vmem:[#allocation2 + $0x1d0] sm:$0xff] %v299
          %364 = vst [vmem:[#allocation2 + $0x1d8] sm:$0xff] %v300
          %365 = vst [vmem:[#allocation2 + $0x1e0] sm:$0xff] %v301
          %366 = vst [vmem:[#allocation2 + $0x1e8] sm:$0xff] %v302
          %367 = vst [vmem:[#allocation2 + $0x1f0] sm:$0xff] %v303
          %368 = vst [vmem:[#allocation2 + $0x1f8] sm:$0xff] %v304
          %369 = vst [vmem:[%s166] sm:$0xff] %v241
          %370 = vst [vmem:[%s166 + $0x8] sm:$0xff] %v242
          %371 = vst [vmem:[%s166 + $0x10] sm:$0xff] %v243
          %372 = vst [vmem:[%s166 + $0x18] sm:$0xff] %v244
          %373 = vst [vmem:[%s166 + $0x20] sm:$0xff] %v245
          %374 = vst [vmem:[%s166 + $0x28] sm:$0xff] %v246
          %375 = vst [vmem:[%s166 + $0x30] sm:$0xff] %v247
          %376 = vst [vmem:[%s166 + $0x38] sm:$0xff] %v248
          %377 = vst [vmem:[%s166 + $0x40] sm:$0xff] %v249
          %378 = vst [vmem:[%s166 + $0x48] sm:$0xff] %v250
          %379 = vst [vmem:[%s166 + $0x50] sm:$0xff] %v251
          %380 = vst [vmem:[%s166 + $0x58] sm:$0xff] %v252
          %381 = vst [vmem:[%s166 + $0x60] sm:$0xff] %v253
          %382 = vst [vmem:[%s166 + $0x68] sm:$0xff] %v254
          %383 = vst [vmem:[%s166 + $0x70] sm:$0xff] %v255
          %384 = vst [vmem:[%s166 + $0x78] sm:$0xff] %v256
          %385 = vst [vmem:[%s166 + $0x80] sm:$0xff] %v257
          %386 = vst [vmem:[%s166 + $0x88] sm:$0xff] %v258
          %387 = vst [vmem:[%s166 + $0x90] sm:$0xff] %v259
          %388 = vst [vmem:[%s166 + $0x98] sm:$0xff] %v260
          %389 = vst [vmem:[%s166 + $0xa0] sm:$0xff] %v261
          %390 = vst [vmem:[%s166 + $0xa8] sm:$0xff] %v262
          %391 = vst [vmem:[%s166 + $0xb0] sm:$0xff] %v263
          %392 = vst [vmem:[%s166 + $0xb8] sm:$0xff] %v264
          %393 = vst [vmem:[%s166 + $0xc0] sm:$0xff] %v265
          %394 = vst [vmem:[%s166 + $0xc8] sm:$0xff] %v266
          %395 = vst [vmem:[%s166 + $0xd0] sm:$0xff] %v267
          %396 = vst [vmem:[%s166 + $0xd8] sm:$0xff] %v268
          %397 = vst [vmem:[%s166 + $0xe0] sm:$0xff] %v269
          %398 = vst [vmem:[%s166 + $0xe8] sm:$0xff] %v270
          %399 = vst [vmem:[%s166 + $0xf0] sm:$0xff] %v271
          %400 = vst [vmem:[%s166 + $0xf8] sm:$0xff] %v272
          %401 = vst [vmem:[%s166 + $0x100] sm:$0xff] %v273
          %402 = vst [vmem:[%s166 + $0x108] sm:$0xff] %v274
          %403 = vst [vmem:[%s166 + $0x110] sm:$0xff] %v275
          %404 = vst [vmem:[%s166 + $0x118] sm:$0xff] %v276
          %405 = vst [vmem:[%s166 + $0x120] sm:$0xff] %v277
          %406 = vst [vmem:[%s166 + $0x128] sm:$0xff] %v278
          %407 = vst [vmem:[%s166 + $0x130] sm:$0xff] %v279
          %408 = vst [vmem:[%s166 + $0x138] sm:$0xff] %v280
          %409 = vst [vmem:[%s166 + $0x140] sm:$0xff] %v281
          %410 = vst [vmem:[%s166 + $0x148] sm:$0xff] %v282
          %411 = vst [vmem:[%s166 + $0x150] sm:$0xff] %v283
          %412 = vst [vmem:[%s166 + $0x158] sm:$0xff] %v284
          %413 = vst [vmem:[%s166 + $0x160] sm:$0xff] %v285
          %414 = vst [vmem:[%s166 + $0x168] sm:$0xff] %v286
          %415 = vst [vmem:[%s166 + $0x170] sm:$0xff] %v287
          %416 = vst [vmem:[%s166 + $0x178] sm:$0xff] %v288
          %417 = vst [vmem:[%s166 + $0x180] sm:$0xff] %v289
          %418 = vst [vmem:[%s166 + $0x188] sm:$0xff] %v290
          %419 = vst [vmem:[%s166 + $0x190] sm:$0xff] %v291
          %420 = vst [vmem:[%s166 + $0x198] sm:$0xff] %v292
          %421 = vst [vmem:[%s166 + $0x1a0] sm:$0xff] %v293
          %422 = vst [vmem:[%s166 + $0x1a8] sm:$0xff] %v294
          %423 = vst [vmem:[%s166 + $0x1b0] sm:$0xff] %v295
          %424 = vst [vmem:[%s166 + $0x1b8] sm:$0xff] %v296
          %425 = vst [vmem:[%s166 + $0x1c0] sm:$0xff] %v297
          %426 = vst [vmem:[%s166 + $0x1c8] sm:$0xff] %v298
          %427 = vst [vmem:[%s166 + $0x1d0] sm:$0xff] %v299
          %428 = vst [vmem:[%s166 + $0x1d8] sm:$0xff] %v300
          %429 = vst [vmem:[%s166 + $0x1e0] sm:$0xff] %v301
          %430 = vst [vmem:[%s166 + $0x1e8] sm:$0xff] %v302
          %431 = vst [vmem:[%s166 + $0x1f0] sm:$0xff] %v303
          %432 = vst [vmem:[%s166 + $0x1f8] sm:$0xff] %v304
        $region32: #{tpu_custom_call.1} parent=23 // pred_fallthru
          _
        %p433 = scmp.ne.s32.totalorder %s25, 0
        // Predicated region
        $region33: #{tpu_custom_call.1} parent=23 // pred_check
          %p434 = pneg %p433
        $region34: #{tpu_custom_call.1} parent=23 // pred_check_branch
          %436 = sbr.rel (%p434) target = $region36
        $region35: #{tpu_custom_call.1} parent=23 // pred_region
          %v437 = vld [vmem:[#allocation2] sm:$0xff]
          %v438 = vld [vmem:[#allocation2 + $0x8] sm:$0xff]
          %v439 = vld [vmem:[#allocation2 + $0x10] sm:$0xff]
          %v440 = vld [vmem:[#allocation2 + $0x18] sm:$0xff]
          %v441 = vld [vmem:[#allocation2 + $0x20] sm:$0xff]
          %v442 = vld [vmem:[#allocation2 + $0x28] sm:$0xff]
          %v443 = vld [vmem:[#allocation2 + $0x30] sm:$0xff]
          %v444 = vld [vmem:[#allocation2 + $0x38] sm:$0xff]
          %v445 = vld [vmem:[#allocation2 + $0x40] sm:$0xff]
          %v446 = vld [vmem:[#allocation2 + $0x48] sm:$0xff]
          %v447 = vld [vmem:[#allocation2 + $0x50] sm:$0xff]
          %v448 = vld [vmem:[#allocation2 + $0x58] sm:$0xff]
          %v449 = vld [vmem:[#allocation2 + $0x60] sm:$0xff]
          %v450 = vld [vmem:[#allocation2 + $0x68] sm:$0xff]
          %v451 = vld [vmem:[#allocation2 + $0x70] sm:$0xff]
          %v452 = vld [vmem:[#allocation2 + $0x78] sm:$0xff]
          %v453 = vld [vmem:[#allocation2 + $0x80] sm:$0xff]
          %v454 = vld [vmem:[#allocation2 + $0x88] sm:$0xff]
          %v455 = vld [vmem:[#allocation2 + $0x90] sm:$0xff]
          %v456 = vld [vmem:[#allocation2 + $0x98] sm:$0xff]
          %v457 = vld [vmem:[#allocation2 + $0xa0] sm:$0xff]
          %v458 = vld [vmem:[#allocation2 + $0xa8] sm:$0xff]
          %v459 = vld [vmem:[#allocation2 + $0xb0] sm:$0xff]
          %v460 = vld [vmem:[#allocation2 + $0xb8] sm:$0xff]
          %v461 = vld [vmem:[#allocation2 + $0xc0] sm:$0xff]
          %v462 = vld [vmem:[#allocation2 + $0xc8] sm:$0xff]
          %v463 = vld [vmem:[#allocation2 + $0xd0] sm:$0xff]
          %v464 = vld [vmem:[#allocation2 + $0xd8] sm:$0xff]
          %v465 = vld [vmem:[#allocation2 + $0xe0] sm:$0xff]
          %v466 = vld [vmem:[#allocation2 + $0xe8] sm:$0xff]
          %v467 = vld [vmem:[#allocation2 + $0xf0] sm:$0xff]
          %v468 = vld [vmem:[#allocation2 + $0xf8] sm:$0xff]
          %v469 = vld [vmem:[#allocation2 + $0x100] sm:$0xff]
          %v470 = vld [vmem:[#allocation2 + $0x108] sm:$0xff]
          %v471 = vld [vmem:[#allocation2 + $0x110] sm:$0xff]
          %v472 = vld [vmem:[#allocation2 + $0x118] sm:$0xff]
          %v473 = vld [vmem:[#allocation2 + $0x120] sm:$0xff]
          %v474 = vld [vmem:[#allocation2 + $0x128] sm:$0xff]
          %v475 = vld [vmem:[#allocation2 + $0x130] sm:$0xff]
          %v476 = vld [vmem:[#allocation2 + $0x138] sm:$0xff]
          %v477 = vld [vmem:[#allocation2 + $0x140] sm:$0xff]
          %v478 = vld [vmem:[#allocation2 + $0x148] sm:$0xff]
          %v479 = vld [vmem:[#allocation2 + $0x150] sm:$0xff]
          %v480 = vld [vmem:[#allocation2 + $0x158] sm:$0xff]
          %v481 = vld [vmem:[#allocation2 + $0x160] sm:$0xff]
          %v482 = vld [vmem:[#allocation2 + $0x168] sm:$0xff]
          %v483 = vld [vmem:[#allocation2 + $0x170] sm:$0xff]
          %v484 = vld [vmem:[#allocation2 + $0x178] sm:$0xff]
          %v485 = vld [vmem:[#allocation2 + $0x180] sm:$0xff]
          %v486 = vld [vmem:[#allocation2 + $0x188] sm:$0xff]
          %v487 = vld [vmem:[#allocation2 + $0x190] sm:$0xff]
          %v488 = vld [vmem:[#allocation2 + $0x198] sm:$0xff]
          %v489 = vld [vmem:[#allocation2 + $0x1a0] sm:$0xff]
          %v490 = vld [vmem:[#allocation2 + $0x1a8] sm:$0xff]
          %v491 = vld [vmem:[#allocation2 + $0x1b0] sm:$0xff]
          %v492 = vld [vmem:[#allocation2 + $0x1b8] sm:$0xff]
          %v493 = vld [vmem:[#allocation2 + $0x1c0] sm:$0xff]
          %v494 = vld [vmem:[#allocation2 + $0x1c8] sm:$0xff]
          %v495 = vld [vmem:[#allocation2 + $0x1d0] sm:$0xff]
          %v496 = vld [vmem:[#allocation2 + $0x1d8] sm:$0xff]
          %v497 = vld [vmem:[#allocation2 + $0x1e0] sm:$0xff]
          %v498 = vld [vmem:[#allocation2 + $0x1e8] sm:$0xff]
          %v499 = vld [vmem:[#allocation2 + $0x1f0] sm:$0xff]
          %v500 = vld [vmem:[#allocation2 + $0x1f8] sm:$0xff]
          %501 = vst [vmem:[%s166] sm:$0xff] %v437
          %502 = vst [vmem:[%s166 + $0x8] sm:$0xff] %v438
          %503 = vst [vmem:[%s166 + $0x10] sm:$0xff] %v439
          %504 = vst [vmem:[%s166 + $0x18] sm:$0xff] %v440
          %505 = vst [vmem:[%s166 + $0x20] sm:$0xff] %v441
          %506 = vst [vmem:[%s166 + $0x28] sm:$0xff] %v442
          %507 = vst [vmem:[%s166 + $0x30] sm:$0xff] %v443
          %508 = vst [vmem:[%s166 + $0x38] sm:$0xff] %v444
          %509 = vst [vmem:[%s166 + $0x40] sm:$0xff] %v445
          %510 = vst [vmem:[%s166 + $0x48] sm:$0xff] %v446
          %511 = vst [vmem:[%s166 + $0x50] sm:$0xff] %v447
          %512 = vst [vmem:[%s166 + $0x58] sm:$0xff] %v448
          %513 = vst [vmem:[%s166 + $0x60] sm:$0xff] %v449
          %514 = vst [vmem:[%s166 + $0x68] sm:$0xff] %v450
          %515 = vst [vmem:[%s166 + $0x70] sm:$0xff] %v451
          %516 = vst [vmem:[%s166 + $0x78] sm:$0xff] %v452
          %517 = vst [vmem:[%s166 + $0x80] sm:$0xff] %v453
          %518 = vst [vmem:[%s166 + $0x88] sm:$0xff] %v454
          %519 = vst [vmem:[%s166 + $0x90] sm:$0xff] %v455
          %520 = vst [vmem:[%s166 + $0x98] sm:$0xff] %v456
          %521 = vst [vmem:[%s166 + $0xa0] sm:$0xff] %v457
          %522 = vst [vmem:[%s166 + $0xa8] sm:$0xff] %v458
          %523 = vst [vmem:[%s166 + $0xb0] sm:$0xff] %v459
          %524 = vst [vmem:[%s166 + $0xb8] sm:$0xff] %v460
          %525 = vst [vmem:[%s166 + $0xc0] sm:$0xff] %v461
          %526 = vst [vmem:[%s166 + $0xc8] sm:$0xff] %v462
          %527 = vst [vmem:[%s166 + $0xd0] sm:$0xff] %v463
          %528 = vst [vmem:[%s166 + $0xd8] sm:$0xff] %v464
          %529 = vst [vmem:[%s166 + $0xe0] sm:$0xff] %v465
          %530 = vst [vmem:[%s166 + $0xe8] sm:$0xff] %v466
          %531 = vst [vmem:[%s166 + $0xf0] sm:$0xff] %v467
          %532 = vst [vmem:[%s166 + $0xf8] sm:$0xff] %v468
          %533 = vst [vmem:[%s166 + $0x100] sm:$0xff] %v469
          %534 = vst [vmem:[%s166 + $0x108] sm:$0xff] %v470
          %535 = vst [vmem:[%s166 + $0x110] sm:$0xff] %v471
          %536 = vst [vmem:[%s166 + $0x118] sm:$0xff] %v472
          %537 = vst [vmem:[%s166 + $0x120] sm:$0xff] %v473
          %538 = vst [vmem:[%s166 + $0x128] sm:$0xff] %v474
          %539 = vst [vmem:[%s166 + $0x130] sm:$0xff] %v475
          %540 = vst [vmem:[%s166 + $0x138] sm:$0xff] %v476
          %541 = vst [vmem:[%s166 + $0x140] sm:$0xff] %v477
          %542 = vst [vmem:[%s166 + $0x148] sm:$0xff] %v478
          %543 = vst [vmem:[%s166 + $0x150] sm:$0xff] %v479
          %544 = vst [vmem:[%s166 + $0x158] sm:$0xff] %v480
          %545 = vst [vmem:[%s166 + $0x160] sm:$0xff] %v481
          %546 = vst [vmem:[%s166 + $0x168] sm:$0xff] %v482
          %547 = vst [vmem:[%s166 + $0x170] sm:$0xff] %v483
          %548 = vst [vmem:[%s166 + $0x178] sm:$0xff] %v484
          %549 = vst [vmem:[%s166 + $0x180] sm:$0xff] %v485
          %550 = vst [vmem:[%s166 + $0x188] sm:$0xff] %v486
          %551 = vst [vmem:[%s166 + $0x190] sm:$0xff] %v487
          %552 = vst [vmem:[%s166 + $0x198] sm:$0xff] %v488
          %553 = vst [vmem:[%s166 + $0x1a0] sm:$0xff] %v489
          %554 = vst [vmem:[%s166 + $0x1a8] sm:$0xff] %v490
          %555 = vst [vmem:[%s166 + $0x1b0] sm:$0xff] %v491
          %556 = vst [vmem:[%s166 + $0x1b8] sm:$0xff] %v492
          %557 = vst [vmem:[%s166 + $0x1c0] sm:$0xff] %v493
          %558 = vst [vmem:[%s166 + $0x1c8] sm:$0xff] %v494
          %559 = vst [vmem:[%s166 + $0x1d0] sm:$0xff] %v495
          %560 = vst [vmem:[%s166 + $0x1d8] sm:$0xff] %v496
          %561 = vst [vmem:[%s166 + $0x1e0] sm:$0xff] %v497
          %562 = vst [vmem:[%s166 + $0x1e8] sm:$0xff] %v498
          %563 = vst [vmem:[%s166 + $0x1f0] sm:$0xff] %v499
          %564 = vst [vmem:[%s166 + $0x1f8] sm:$0xff] %v500
        $region36: #{tpu_custom_call.1} parent=23 // pred_fallthru
          _
        %s565 = sand.u32 %s79, 1
        %s566 = scalar_lea.sflag [#allocation5], %s565
        %s567 = sand.u32 %s79, 1
        %s568 = smul.addr %s567, 512
        %s569 = scalar_lea.vmem [#allocation6], %s568
        // Predicated region
        $region37: #{tpu_custom_call.1} parent=23 // pred_check
          %p570 = pneg %p89
        $region38: #{tpu_custom_call.1} parent=23 // pred_check_branch
          %572 = sbr.rel (%p570) target = $region40
        $region39: #{tpu_custom_call.1} parent=23 // pred_region
          %s573 = smul.u32 %s25, 4
          %s574 = sadd.s32 %s573, %s24
          %s575 = smul.u32 4, %s23
          %s576 = smul.u32 16, %s574
          %578 = vsyncadd %s566, 0
          %s579 = smul.addr %s575, 128
          %s580 = sadd.s32 %s576, %s579
          %s581 = smul.addr %s580, 8
          %s582 = scalar_lea.hbm %s1, %s581
          %s583 = sshll.u32 %s569, 4
          %s584 = int_to_ptr.vmem [resolvable:$true] %s583
          %s585 = sshll.u32 %s582, 4
          %s586 = int_to_ptr.hbm [resolvable:$true] %s585
          %591 = dma.vmem_to_hbm [thread:$0]  %s584, 8192, %s586, %s566, 2048, 16384, 128
        $region40: #{tpu_custom_call.1} parent=23 // pred_fallthru
          _
      $region24: #{tpu_custom_call.1} parent=5 // pred_fallthru
        _
      %p592 = scmp.le.s32.totalorder 2, %s13
      // Predicated region
      $region41: #{tpu_custom_call.1} parent=5 // pred_check
        %p593 = pneg %p592
      $region42: #{tpu_custom_call.1} parent=5 // pred_check_branch
        %595 = sbr.rel (%p593) target = $region44
      $region43: #{tpu_custom_call.1} parent=5 // pred_region
        %s596 = ssub.s32 %s13, 2
        // Predicated region
        $region45: #{tpu_custom_call.1} parent=43 // pred_check
          %p597 = pneg %p95
        $region46: #{tpu_custom_call.1} parent=43 // pred_check_branch
          %599 = sbr.rel (%p597) target = $region48
        $region47: #{tpu_custom_call.1} parent=43 // pred_region
          %s600 = sand.u32 %s80, 1
          %s601 = scalar_lea.sflag [#allocation5], %s600
          %s602 = sand.u32 %s80, 1
          %s603 = smul.addr %s602, 512
          %s604 = scalar_lea.vmem [#allocation6], %s603
          %606 = dma.done %s601, 8192
        $region48: #{tpu_custom_call.1} parent=43 // pred_fallthru
          _
      $region44: #{tpu_custom_call.1} parent=5 // pred_fallthru
        _
    $region6: #{tpu_custom_call.1} parent=1 // loop_footer
      %s17 = sadd.s32 1, %s13
    $region7: #{tpu_custom_call.1} parent=1 // loop_footer_branch
      %12 = sbr.rel target = $region3
    $region8: #{tpu_custom_call.1} parent=1 // loop_exit
      _
    %607 = vsyncpa [#allocation4], 1
    %s608 = scalar_lea.sflag [#allocation4], 1
    %609 = vsyncpa %s608, 1
    %610 = vsyncpa [#allocation5], 1
    %s611 = scalar_lea.sflag [#allocation5], 1
    %612 = vsyncpa %s611, 1

</llo_original>
